<compile_context>
chip_gen: v6e
topology: v6e:2x2x1
jax: 0.10.0
libtpu: 0.0.40
codegen_flags: <defaults>
</compile_context>

<pallas_src>
import jax
import jax.numpy as jnp
from jax import lax
from jax.experimental import pallas as pl
from jax.experimental.pallas import tpu as pltpu

H1, H2 = 20, 10  # hidden widths from the PyTorch module


def _round_up(x, m):
    return (x + m - 1) // m * m


def _vmem_capacity_bytes():
    """Physical VMEM per TensorCore; conservative (v7x) fallback if unqueryable."""
    try:
        cap = getattr(pltpu.get_tpu_info(), "vmem_capacity_bytes", None)
        if cap:
            return int(cap)
    except Exception:
        pass
    return 64 * 1024 * 1024


def _resident_weight_vmem_bytes(d, mm_bytes):
    """Approx. VMEM footprint of the grid-invariant weights (with lane/sublane pad)."""
    d_lanes = _round_up(d, 128)
    d_sub = _round_up(d, 32)
    w1 = d_sub * 128 * mm_bytes      # (D, 20): 20 lanes pad to 128
    w4 = 32 * d_lanes * mm_bytes     # (20, D): 20 sublanes pad to <=32
    b4 = 8 * d_lanes * 4             # (1, D) f32
    small = 64 * 1024                # w2, w3, b1..b3
    return w1 + w4 + b4 + small


def sae_kernel(x_ref, w1_ref, b1_ref, w2_ref, b2_ref, w3_ref, b3_ref,
               w4_ref, b4_ref, o_ref):
    """One batch tile of the SAE forward pass.

    All weights are pre-transposed to (in, out) so every dot is the canonical
    MXU contraction; accumulation is f32, sigmoid epilogue is f32 (EUP).
    """
    # x stays f32 in HBM; on-chip cast to the matmul dtype (bf16 fast path).
    x = x_ref[...].astype(w1_ref.dtype)                                 # (tb, D)
    h = jax.nn.sigmoid(
        jnp.dot(x, w1_ref[...], preferred_element_type=jnp.float32) + b1_ref[...])
    h = jax.nn.sigmoid(
        jnp.dot(h, w2_ref[...], preferred_element_type=jnp.float32) + b2_ref[...])
    h = jax.nn.sigmoid(
        jnp.dot(h, w3_ref[...], preferred_element_type=jnp.float32) + b3_ref[...])
    h = h.astype(w4_ref.dtype)                                          # (tb, 20)
    y = jnp.dot(h, w4_ref[...], preferred_element_type=jnp.float32) + b4_ref[...]
    o_ref[...] = y.astype(o_ref.dtype)                                  # (tb, D)


def prepare_params(params, use_bf16=True):
    """One-time transpose/cast of PyTorch-convention (out, in) params."""
    mm_dtype = jnp.bfloat16 if use_bf16 else jnp.float32
    return {
        "mm_dtype": mm_dtype,
        "out_dtype": jnp.bfloat16 if use_bf16 else jnp.float32,
        "w1": jnp.asarray(params["fc1_w"]).T.astype(mm_dtype),      # (D, 20)
        "b1": params["fc1_b"].reshape(1, H1).astype(jnp.float32),
        "w2": jnp.asarray(params["fc2_w"]).T.astype(jnp.float32),   # (20, 10)
        "b2": params["fc2_b"].reshape(1, H2).astype(jnp.float32),
        "w3": jnp.asarray(params["fc3_w"]).T.astype(jnp.float32),   # (10, 20)
        "b3": params["fc3_b"].reshape(1, H1).astype(jnp.float32),
        "w4": jnp.asarray(params["fc4_w"]).T.astype(mm_dtype),      # (20, D)
        "b4": params["fc4_b"].reshape(1, -1).astype(jnp.float32),   # (1, D)
    }


def sae_forward(x, prep, tile_b=None):
    """x: (B, nb_movies) f32. Returns (B, nb_movies) in prep['out_dtype']."""
    B, D = x.shape
    mm_bytes = jnp.dtype(prep["mm_dtype"]).itemsize
    out_dtype = prep["out_dtype"]
    out_bytes = jnp.dtype(out_dtype).itemsize

    d_lanes = _round_up(D, 128)                 # VMEM lane padding of the feature dim
    w_vmem = _resident_weight_vmem_bytes(D, mm_bytes)
    vmem_cap = _vmem_capacity_bytes()

    if tile_b is None:
        # Generation-aware IO budget: VMEM left after (conservatively double
        # buffered) resident weights, with headroom for compiler scratch.
        # NOTE: weights use constant index_maps; if Pallas single-buffers them
        # this is simply extra slack (pl.Buffered(1) intentionally not used).
        io_budget = max(int(0.70 * vmem_cap) - 2 * w_vmem, 8 * 1024 * 1024)
        per_row = 2 * d_lanes * (4 + out_bytes)  # double-buffered f32 x + out tiles
        tile_b = 512
        while tile_b > 16 and tile_b * per_row > io_budget:
            tile_b //= 2
        # Keep >= 2 grid steps so the "parallel" axis shards across v7x's 2 TCs.
        half_b = _round_up(max(pl.cdiv(B, 2), 1), 16)
        tile_b = min(tile_b, half_b)
        # Never let the block exceed the sublane-rounded batch.
        tile_b = min(tile_b, _round_up(B, 8))
        tile_b = max(tile_b, 8)
    assert tile_b % 8 == 0

    grid = (pl.cdiv(B, tile_b),)

    vmem_need = (2 * tile_b * d_lanes * 4            # x tiles (f32, double-buffered)
                 + 2 * tile_b * d_lanes * out_bytes  # out tiles
                 + 2 * w_vmem                        # resident weights (worst case)
                 + (2 << 20))                        # slack
    vmem_limit = int(min(max(vmem_need, 32 << 20), int(0.9 * vmem_cap)))

    weight_keys = ("w1", "b1", "w2", "b2", "w3", "b3", "w4", "b4")
    weight_hbm = sum(int(prep[k].size) * prep[k].dtype.itemsize for k in weight_keys)
    cost = pl.CostEstimate(
        flops=int(2 * B * D * H1 * 2 + 2 * B * H1 * H2 * 2),      # fc1+fc4 dominate
        transcendentals=int(B * (H1 + H2 + H1)),                   # sigmoids
        bytes_accessed=int(B * D * (4 + out_bytes) + weight_hbm),
    )

    out = pl.pallas_call(
        sae_kernel,
        out_shape=jax.ShapeDtypeStruct((B, D), out_dtype),
        grid=grid,
        in_specs=[
            pl.BlockSpec((tile_b, D), lambda i: (i, 0)),   # x: batch-tiled, pipelined
            pl.BlockSpec((D, H1), lambda i: (0, 0)),       # w1 (VMEM-resident)
            pl.BlockSpec((1, H1), lambda i: (0, 0)),       # b1
            pl.BlockSpec((H1, H2), lambda i: (0, 0)),      # w2
            pl.BlockSpec((1, H2), lambda i: (0, 0)),       # b2
            pl.BlockSpec((H2, H1), lambda i: (0, 0)),      # w3
            pl.BlockSpec((1, H1), lambda i: (0, 0)),       # b3
            pl.BlockSpec((H1, D), lambda i: (0, 0)),       # w4 (pre-transposed)
            pl.BlockSpec((1, D), lambda i: (0, 0)),        # b4
        ],
        out_specs=pl.BlockSpec((tile_b, D), lambda i: (i, 0)),
        compiler_params=pltpu.CompilerParams(
            dimension_semantics=("parallel",),   # batch tiles shard across v7x's 2 TCs
            vmem_limit_bytes=vmem_limit,
        ),
        cost_estimate=cost,
    )(x, prep["w1"], prep["b1"], prep["w2"], prep["b2"],
      prep["w3"], prep["b3"], prep["w4"], prep["b4"])
    return out


def init_params(key, nb_movies):
    """Deterministic init mimicking PyTorch nn.Linear defaults (weights (out, in))."""
    dims = [(nb_movies, H1), (H1, H2), (H2, H1), (H1, nb_movies)]  # (in, out)
    names = ["fc1", "fc2", "fc3", "fc4"]
    params = {}
    for name, (fan_in, fan_out) in zip(names, dims):
        key, kw, kb = jax.random.split(key, 3)
        bound = 1.0 / jnp.sqrt(jnp.float32(fan_in))
        params[f"{name}_w"] = jax.random.uniform(
            kw, (fan_out, fan_in), jnp.float32, -bound, bound)
        params[f"{name}_b"] = jax.random.uniform(
            kb, (fan_out,), jnp.float32, -bound, bound)
    return params


def sae_reference(x, params):
    """Plain-JAX reference matching PyTorch semantics (high-precision f32)."""
    hp = lax.Precision.HIGHEST
    h = jax.nn.sigmoid(jnp.dot(x, params["fc1_w"].T, precision=hp) + params["fc1_b"])
    h = jax.nn.sigmoid(jnp.dot(h, params["fc2_w"].T, precision=hp) + params["fc2_b"])
    h = jax.nn.sigmoid(jnp.dot(h, params["fc3_w"].T, precision=hp) + params["fc3_b"])
    return jnp.dot(h, params["fc4_w"].T, precision=hp) + params["fc4_b"]


if __name__ == "__main__":
    key = jax.random.PRNGKey(0)
    NB_MOVIES = 32   # stand-in for nb_movies (data-dependent in the original)
    BATCH = 8        # toy size; kernel pays off once B * nb_movies is large

    key, kp, kx = jax.random.split(key, 3)
    params = init_params(kp, NB_MOVIES)
    x = jax.random.uniform(kx, (BATCH, NB_MOVIES), jnp.float32, 0.0, 5.0)

    ref = sae_reference(x, params)

    # Exact path: f32 weights, f32 output.
    prep_f32 = prepare_params(params, use_bf16=False)
    out_f32 = jax.block_until_ready(sae_forward(x, prep_f32))
    assert out_f32.shape == (BATCH, NB_MOVIES)
    assert out_f32.dtype == jnp.float32
    assert jnp.allclose(out_f32, ref, atol=1e-3, rtol=1e-3), "f32 path mismatch vs reference"

    # Fast path: bf16 fc1/fc4 weights, in-kernel bf16 cast of x, bf16 output,
    # f32 MXU accumulation + f32 sigmoid epilogue.
    prep_bf16 = prepare_params(params, use_bf16=True)
    out_bf16 = jax.block_until_ready(sae_forward(x, prep_bf16))
    assert out_bf16.shape == (BATCH, NB_MOVIES)
    assert out_bf16.dtype == jnp.bfloat16
    assert jnp.allclose(out_bf16.astype(jnp.float32), ref, atol=6e-2, rtol=6e-2), \
        "bf16 path mismatch vs reference"

    print("KERNEL_OK")
</pallas_src>

<mosaic_0001>
module attributes {stable_mosaic.version = 11 : i64} {
  func.func @sae_kernel(%arg0: i32, %arg1: memref<8x32xf32, #tpu.memory_space<vmem>>, %arg2: memref<32x20xf32, #tpu.memory_space<vmem>>, %arg3: memref<1x20xf32, #tpu.memory_space<vmem>>, %arg4: memref<20x10xf32, #tpu.memory_space<vmem>>, %arg5: memref<1x10xf32, #tpu.memory_space<vmem>>, %arg6: memref<10x20xf32, #tpu.memory_space<vmem>>, %arg7: memref<1x20xf32, #tpu.memory_space<vmem>>, %arg8: memref<20x32xf32, #tpu.memory_space<vmem>>, %arg9: memref<1x32xf32, #tpu.memory_space<vmem>>, %arg10: memref<8x32xf32, #tpu.memory_space<vmem>>) attributes {dimension_semantics = [#tpu.dimension_semantics<parallel>], iteration_bounds = array<i64: 1>, scalar_prefetch = 0 : i64, scratch_operands = 0 : i64, tpu.core_type = #tpu.core_type<tc>, window_params = [{transform_indices = @transform_0, window_bounds = array<i64: 8, 32>}, {pipeline_mode = #tpu.pipeline_mode<synchronous>, transform_indices = @transform_1, window_bounds = array<i64: 32, 20>}, {pipeline_mode = #tpu.pipeline_mode<synchronous>, transform_indices = @transform_2, window_bounds = array<i64: 1, 20>}, {pipeline_mode = #tpu.pipeline_mode<synchronous>, transform_indices = @transform_3, window_bounds = array<i64: 20, 10>}, {pipeline_mode = #tpu.pipeline_mode<synchronous>, transform_indices = @transform_4, window_bounds = array<i64: 1, 10>}, {pipeline_mode = #tpu.pipeline_mode<synchronous>, transform_indices = @transform_5, window_bounds = array<i64: 10, 20>}, {pipeline_mode = #tpu.pipeline_mode<synchronous>, transform_indices = @transform_6, window_bounds = array<i64: 1, 20>}, {pipeline_mode = #tpu.pipeline_mode<synchronous>, transform_indices = @transform_7, window_bounds = array<i64: 20, 32>}, {pipeline_mode = #tpu.pipeline_mode<synchronous>, transform_indices = @transform_8, window_bounds = array<i64: 1, 32>}, {transform_indices = @transform_9, window_bounds = array<i64: 8, 32>}]} {
    %c0 = arith.constant 0 : index
    %c0_0 = arith.constant 0 : index
    %0 = vector.load %arg1[%c0, %c0_0] : memref<8x32xf32, #tpu.memory_space<vmem>>, vector<8x32xf32>
    %c0_1 = arith.constant 0 : index
    %c0_2 = arith.constant 0 : index
    %1 = vector.load %arg2[%c0_1, %c0_2] : memref<32x20xf32, #tpu.memory_space<vmem>>, vector<32x20xf32>
    %cst = arith.constant dense<0.000000e+00> : vector<8x20xf32>
    %2 = tpu.matmul %0, %1, %cst {dimension_numbers = #tpu.dot_dimension_numbers<[1], [0], [0], [1], [0, 0, 1, 1], [], []>} : vector<8x32xf32>, vector<32x20xf32>, vector<8x20xf32> -> vector<8x20xf32>
    %c0_3 = arith.constant 0 : index
    %c0_4 = arith.constant 0 : index
    %3 = vector.load %arg3[%c0_3, %c0_4] : memref<1x20xf32, #tpu.memory_space<vmem>>, vector<1x20xf32>
    %4 = vector.broadcast %3 : vector<1x20xf32> to vector<8x20xf32>
    %5 = arith.addf %2, %4 : vector<8x20xf32>
    %6 = arith.negf %5 : vector<8x20xf32>
    %7 = math.exp %6 : vector<8x20xf32>
    %cst_5 = arith.constant 1.000000e+00 : f32
    %8 = vector.broadcast %cst_5 : f32 to vector<8x20xf32>
    %9 = arith.addf %8, %7 : vector<8x20xf32>
    %10 = arith.divf %8, %9 : vector<8x20xf32>
    %c0_6 = arith.constant 0 : index
    %c0_7 = arith.constant 0 : index
    %11 = vector.load %arg4[%c0_6, %c0_7] : memref<20x10xf32, #tpu.memory_space<vmem>>, vector<20x10xf32>
    %cst_8 = arith.constant dense<0.000000e+00> : vector<8x10xf32>
    %12 = tpu.matmul %10, %11, %cst_8 {dimension_numbers = #tpu.dot_dimension_numbers<[1], [0], [0], [1], [0, 0, 1, 1], [], []>} : vector<8x20xf32>, vector<20x10xf32>, vector<8x10xf32> -> vector<8x10xf32>
    %c0_9 = arith.constant 0 : index
    %c0_10 = arith.constant 0 : index
    %13 = vector.load %arg5[%c0_9, %c0_10] : memref<1x10xf32, #tpu.memory_space<vmem>>, vector<1x10xf32>
    %14 = vector.broadcast %13 : vector<1x10xf32> to vector<8x10xf32>
    %15 = arith.addf %12, %14 : vector<8x10xf32>
    %16 = arith.negf %15 : vector<8x10xf32>
    %17 = math.exp %16 : vector<8x10xf32>
    %cst_11 = arith.constant 1.000000e+00 : f32
    %18 = vector.broadcast %cst_11 : f32 to vector<8x10xf32>
    %19 = arith.addf %18, %17 : vector<8x10xf32>
    %20 = arith.divf %18, %19 : vector<8x10xf32>
    %c0_12 = arith.constant 0 : index
    %c0_13 = arith.constant 0 : index
    %21 = vector.load %arg6[%c0_12, %c0_13] : memref<10x20xf32, #tpu.memory_space<vmem>>, vector<10x20xf32>
    %cst_14 = arith.constant dense<0.000000e+00> : vector<8x20xf32>
    %22 = tpu.matmul %20, %21, %cst_14 {dimension_numbers = #tpu.dot_dimension_numbers<[1], [0], [0], [1], [0, 0, 1, 1], [], []>} : vector<8x10xf32>, vector<10x20xf32>, vector<8x20xf32> -> vector<8x20xf32>
    %c0_15 = arith.constant 0 : index
    %c0_16 = arith.constant 0 : index
    %23 = vector.load %arg7[%c0_15, %c0_16] : memref<1x20xf32, #tpu.memory_space<vmem>>, vector<1x20xf32>
    %24 = vector.broadcast %23 : vector<1x20xf32> to vector<8x20xf32>
    %25 = arith.addf %22, %24 : vector<8x20xf32>
    %26 = arith.negf %25 : vector<8x20xf32>
    %27 = math.exp %26 : vector<8x20xf32>
    %cst_17 = arith.constant 1.000000e+00 : f32
    %28 = vector.broadcast %cst_17 : f32 to vector<8x20xf32>
    %29 = arith.addf %28, %27 : vector<8x20xf32>
    %30 = arith.divf %28, %29 : vector<8x20xf32>
    %c0_18 = arith.constant 0 : index
    %c0_19 = arith.constant 0 : index
    %31 = vector.load %arg8[%c0_18, %c0_19] : memref<20x32xf32, #tpu.memory_space<vmem>>, vector<20x32xf32>
    %cst_20 = arith.constant dense<0.000000e+00> : vector<8x32xf32>
    %32 = tpu.matmul %30, %31, %cst_20 {dimension_numbers = #tpu.dot_dimension_numbers<[1], [0], [0], [1], [0, 0, 1, 1], [], []>} : vector<8x20xf32>, vector<20x32xf32>, vector<8x32xf32> -> vector<8x32xf32>
    %c0_21 = arith.constant 0 : index
    %c0_22 = arith.constant 0 : index
    %33 = vector.load %arg9[%c0_21, %c0_22] : memref<1x32xf32, #tpu.memory_space<vmem>>, vector<1x32xf32>
    %34 = vector.broadcast %33 : vector<1x32xf32> to vector<8x32xf32>
    %35 = arith.addf %32, %34 : vector<8x32xf32>
    %c0_23 = arith.constant 0 : index
    %c0_24 = arith.constant 0 : index
    %36 = vector.load %arg10[%c0_23, %c0_24] : memref<8x32xf32, #tpu.memory_space<vmem>>, vector<8x32xf32>
    tpu.vector_store %arg10[%c0_23, %c0_24], %35 {strides = array<i32>} : memref<8x32xf32, #tpu.memory_space<vmem>>, vector<8x32xf32>,
    return
  }
  func.func @transform_0(%arg0: i32) -> (i32, i32) {
    %c0_i32 = arith.constant 0 : i32
    %c0_i32_0 = arith.constant 0 : i32
    return %arg0, %c0_i32 : i32, i32
  }
  func.func @transform_1(%arg0: i32) -> (i32, i32) {
    %c0_i32 = arith.constant 0 : i32
    %c0_i32_0 = arith.constant 0 : i32
    %c0_i32_1 = arith.constant 0 : i32
    return %c0_i32, %c0_i32_0 : i32, i32
  }
  func.func @transform_2(%arg0: i32) -> (i32, i32) {
    %c0_i32 = arith.constant 0 : i32
    %c0_i32_0 = arith.constant 0 : i32
    %c0_i32_1 = arith.constant 0 : i32
    return %c0_i32, %c0_i32_0 : i32, i32
  }
  func.func @transform_3(%arg0: i32) -> (i32, i32) {
    %c0_i32 = arith.constant 0 : i32
    %c0_i32_0 = arith.constant 0 : i32
    %c0_i32_1 = arith.constant 0 : i32
    return %c0_i32, %c0_i32_0 : i32, i32
  }
  func.func @transform_4(%arg0: i32) -> (i32, i32) {
    %c0_i32 = arith.constant 0 : i32
    %c0_i32_0 = arith.constant 0 : i32
    %c0_i32_1 = arith.constant 0 : i32
    return %c0_i32, %c0_i32_0 : i32, i32
  }
  func.func @transform_5(%arg0: i32) -> (i32, i32) {
    %c0_i32 = arith.constant 0 : i32
    %c0_i32_0 = arith.constant 0 : i32
    %c0_i32_1 = arith.constant 0 : i32
    return %c0_i32, %c0_i32_0 : i32, i32
  }
  func.func @transform_6(%arg0: i32) -> (i32, i32) {
    %c0_i32 = arith.constant 0 : i32
    %c0_i32_0 = arith.constant 0 : i32
    %c0_i32_1 = arith.constant 0 : i32
    return %c0_i32, %c0_i32_0 : i32, i32
  }
  func.func @transform_7(%arg0: i32) -> (i32, i32) {
    %c0_i32 = arith.constant 0 : i32
    %c0_i32_0 = arith.constant 0 : i32
    %c0_i32_1 = arith.constant 0 : i32
    return %c0_i32, %c0_i32_0 : i32, i32
  }
  func.func @transform_8(%arg0: i32) -> (i32, i32) {
    %c0_i32 = arith.constant 0 : i32
    %c0_i32_0 = arith.constant 0 : i32
    %c0_i32_1 = arith.constant 0 : i32
    return %c0_i32, %c0_i32_0 : i32, i32
  }
  func.func @transform_9(%arg0: i32) -> (i32, i32) {
    %c0_i32 = arith.constant 0 : i32
    %c0_i32_0 = arith.constant 0 : i32
    return %arg0, %c0_i32 : i32, i32
  }
}

</mosaic_0001>

<llo_original>
// kernel: tpu_custom_call.1
$region0: #{tpu_custom_call.1}
  #allocation0 [shape = 'u32[]', space=smem, size = 0x4, offset = 0x4, fixed_abs, tag = 'smem constant byte address 0x4 - core index']
  #allocation1 [shape = 'u32[144,128]{1,0:T(1,128)}', space=vmem, size = 0x12000, scoped, tag = 'internal scratch']
  %s0 = inlined_call_operand.vmem [shape: f32[8,32], index: 0, kind: input, shape index: {}]
  %s1 = inlined_call_operand.vmem [shape: f32[32,20], index: 1, kind: input, shape index: {}]
  %s2 = inlined_call_operand.vmem [shape: f32[1,20], index: 2, kind: input, shape index: {}]
  %s3 = inlined_call_operand.vmem [shape: f32[20,10], index: 3, kind: input, shape index: {}]
  %s4 = inlined_call_operand.vmem [shape: f32[1,10], index: 4, kind: input, shape index: {}]
  %s5 = inlined_call_operand.vmem [shape: f32[10,20], index: 5, kind: input, shape index: {}]
  %s6 = inlined_call_operand.vmem [shape: f32[1,20], index: 6, kind: input, shape index: {}]
  %s7 = inlined_call_operand.vmem [shape: f32[20,32], index: 7, kind: input, shape index: {}]
  %s8 = inlined_call_operand.vmem [shape: f32[1,32], index: 8, kind: input, shape index: {}]
  %s9 = inlined_call_operand.hbm [shape: f32[8,32], index: 9, kind: output, shape index: {}]
  %s10 = sld [smem:[#allocation0]]
  $region46: #{tpu_custom_call.1} parent=0
    _
  %s12 = ssub.s32 1, %s10
  %s13 = scalar_select 0, %s12, %s10
  $region1: #{tpu_custom_call.1} parent=0
    #allocation2 [shape = 'u8[4096]{0}', space=vmem, size = 0x1000, scoped, tag = 'output window, operand 0, single buffered']
    #allocation3 [shape = 's32[1]{0}', space=sflag, size = 0x4, scoped, tag = 'scoped memory for tpu_custom_call.1']
    %14 = vsyncpa [#allocation3], 0
    // Predicated region
    $region2: #{tpu_custom_call.1} parent=1 // pred_check
      _
    $region3: #{tpu_custom_call.1} parent=1 // pred_check_branch
      %16 = sbr.rel (0) target = $region5
    $region4: #{tpu_custom_call.1} parent=1 // pred_region
      _
    $region5: #{tpu_custom_call.1} parent=1 // pred_fallthru
      _
    // Predicated region
    $region6: #{tpu_custom_call.1} parent=1 // pred_check
      _
    $region7: #{tpu_custom_call.1} parent=1 // pred_check_branch
      %18 = sbr.rel (0) target = $region9
    $region8: #{tpu_custom_call.1} parent=1 // pred_region
      _
    $region9: #{tpu_custom_call.1} parent=1 // pred_fallthru
      _
    // Predicated region
    $region10: #{tpu_custom_call.1} parent=1 // pred_check
      _
    $region11: #{tpu_custom_call.1} parent=1 // pred_check_branch
      %20 = sbr.rel (0) target = $region13
    $region12: #{tpu_custom_call.1} parent=1 // pred_region
      _
    $region13: #{tpu_custom_call.1} parent=1 // pred_fallthru
      _
    // Predicated region
    $region14: #{tpu_custom_call.1} parent=1 // pred_check
      _
    $region15: #{tpu_custom_call.1} parent=1 // pred_check_branch
      %22 = sbr.rel (0) target = $region17
    $region16: #{tpu_custom_call.1} parent=1 // pred_region
      _
    $region17: #{tpu_custom_call.1} parent=1 // pred_fallthru
      _
    // Predicated region
    $region18: #{tpu_custom_call.1} parent=1 // pred_check
      _
    $region19: #{tpu_custom_call.1} parent=1 // pred_check_branch
      %24 = sbr.rel (0) target = $region21
    $region20: #{tpu_custom_call.1} parent=1 // pred_region
      _
    $region21: #{tpu_custom_call.1} parent=1 // pred_fallthru
      _
    // Predicated region
    $region22: #{tpu_custom_call.1} parent=1 // pred_check
      _
    $region23: #{tpu_custom_call.1} parent=1 // pred_check_branch
      %26 = sbr.rel (0) target = $region25
    $region24: #{tpu_custom_call.1} parent=1 // pred_region
      _
    $region25: #{tpu_custom_call.1} parent=1 // pred_fallthru
      _
    // Predicated region
    $region26: #{tpu_custom_call.1} parent=1 // pred_check
      _
    $region27: #{tpu_custom_call.1} parent=1 // pred_check_branch
      %28 = sbr.rel (0) target = $region29
    $region28: #{tpu_custom_call.1} parent=1 // pred_region
      _
    $region29: #{tpu_custom_call.1} parent=1 // pred_fallthru
      _
    // Predicated region
    $region30: #{tpu_custom_call.1} parent=1 // pred_check
      _
    $region31: #{tpu_custom_call.1} parent=1 // pred_check_branch
      %30 = sbr.rel (0) target = $region33
    $region32: #{tpu_custom_call.1} parent=1 // pred_region
      _
    $region33: #{tpu_custom_call.1} parent=1 // pred_fallthru
      _
    // Predicated region
    $region34: #{tpu_custom_call.1} parent=1 // pred_check
      _
    $region35: #{tpu_custom_call.1} parent=1 // pred_check_branch
      %32 = sbr.rel (0) target = $region37
    $region36: #{tpu_custom_call.1} parent=1 // pred_region
      _
    $region37: #{tpu_custom_call.1} parent=1 // pred_fallthru
      _
    %v33 = vld [vmem:[%s0] sm:$0xff]
    %v34 = vld [vmem:[%s1] sm:$0xff]
    %v35 = vld [vmem:[%s1 + $0x8] sm:$0xff]
    %v36 = vld [vmem:[%s1 + $0x10] sm:$0xff]
    %v37 = vld [vmem:[%s1 + $0x18] sm:$0xff]
    %v38 = vld [vmem:[%s2] sm:$0x1]
    %v40 = vlaneseq
    %v41 = vshrl.u32 %v40, 7
    %v42 = vsub.s32 0, %v41
    %v43 = vrot.slane %v38, %v42
    %vm45 = vcmask 261120
    %v47 = vsel %vm45, %v33, 0
    %49 = vmatprep.subr.mxu0 0.0
    %50 = vmatpush1.msra.mxu0 0.0
    %51 = vmatprep.subr.mxu0 0.0
    %52 = vmatpush1.msra.mxu0 0.0
    %53 = vmatprep.subr.mxu0 0.0
    %54 = vmatpush1.msra.mxu0 0.0
    %55 = vmatprep.subr.mxu0 0.0
    %56 = vmatpush1.msra.mxu0 0.0
    %57 = vmatprep.subr.mxu0 0.0
    %58 = vmatpush1.msra.mxu0 0.0
    %59 = vmatprep.subr.mxu0 0.0
    %60 = vmatpush1.msra.mxu0 0.0
    %61 = vmatprep.subr.mxu0 0.0
    %62 = vmatpush1.msra.mxu0 0.0
    %63 = vmatprep.subr.mxu0 0.0
    %64 = vmatpush1.msra.mxu0 0.0
    %65 = vmatprep.subr.mxu0 0.0
    %66 = vmatpush1.msra.mxu0 0.0
    %67 = vmatprep.subr.mxu0 0.0
    %68 = vmatpush1.msra.mxu0 0.0
    %69 = vmatprep.subr.mxu0 0.0
    %70 = vmatpush1.msra.mxu0 0.0
    %71 = vmatprep.subr.mxu0 0.0
    %72 = vmatpush1.msra.mxu0 0.0
    %73 = vmatprep.subr.mxu0 0.0
    %74 = vmatpush1.msra.mxu0 %v37
    %75 = vmatprep.subr.mxu0 0.0
    %76 = vmatpush1.msra.mxu0 %v36
    %77 = vmatprep.subr.mxu0 0.0
    %78 = vmatpush1.msra.mxu0 %v35
    %79 = vmatprep.subr.mxu0 0.0
    %80 = vmatpush1.msra.mxu0 %v34
    %81 = vmatprep.subr.mxu0 0.0
    %82 = vmatpush2.msra.mxu0 0.0
    %83 = vmatprep.subr.mxu0 0.0
    %84 = vmatpush2.msra.mxu0 0.0
    %85 = vmatprep.subr.mxu0 0.0
    %86 = vmatpush2.msra.mxu0 0.0
    %87 = vmatprep.subr.mxu0 0.0
    %88 = vmatpush2.msra.mxu0 0.0
    %89 = vmatprep.subr.mxu0 0.0
    %90 = vmatpush2.msra.mxu0 0.0
    %91 = vmatprep.subr.mxu0 0.0
    %92 = vmatpush2.msra.mxu0 0.0
    %93 = vmatprep.subr.mxu0 0.0
    %94 = vmatpush2.msra.mxu0 0.0
    %95 = vmatprep.subr.mxu0 0.0
    %96 = vmatpush2.msra.mxu0 0.0
    %97 = vmatprep.subr.mxu0 0.0
    %98 = vmatpush2.msra.mxu0 0.0
    %99 = vmatprep.subr.mxu0 0.0
    %100 = vmatpush2.msra.mxu0 0.0
    %101 = vmatprep.subr.mxu0 0.0
    %102 = vmatpush2.msra.mxu0 0.0
    %103 = vmatprep.subr.mxu0 0.0
    %104 = vmatpush2.msra.mxu0 0.0
    %105 = vmatprep.subr.mxu0 0.0
    %106 = vmatpush2.msra.mxu0 0.0
    %107 = vmatprep.subr.mxu0 0.0
    %108 = vmatpush2.msra.mxu0 0.0
    %109 = vmatprep.subr.mxu0 0.0
    %110 = vmatpush2.msra.mxu0 0.0
    %111 = vmatprep.subr.mxu0 0.0
    %112 = vmatpush2.msra.mxu0 0.0
    %113 = vmatprep.mubr.f32.mxu0 0.0
    %114 = vmatmul.mubr.f32.gmra.mxu0 %v47
    %v115 = vpop.f32.mrf.mxu0
    %v116 = vadd.f32 %v43, %v115
    %v117 = vpop.f32.mrf.mxu0
    %118 = vdwg.mxu0
    %v119 = vxor.u32 %v116, 2147483648
    %v120 = vmul.f32 %v119, 1.442695
    %v121 = vpow.pop %v120
    %v122 = vadd.f32 %v121, 1.0
    %v123 = vrcp.pop %v122
    %v124 = vmul.f32 1.0, %v123
    %v125 = vld [vmem:[%s3] sm:$0xff]
    %v126 = vld [vmem:[%s3 + $0x8] sm:$0xff]
    %v127 = vld [vmem:[%s3 + $0x10] sm:$0xf]
    %v128 = vld [vmem:[%s4] sm:$0x1]
    %v130 = vlaneseq
    %v131 = vshrl.u32 %v130, 7
    %v132 = vsub.s32 0, %v131
    %v133 = vrot.slane %v128, %v132
    %vm135 = vcmask 162816
    %v137 = vsel %vm135, %v124, 0
    %vm139 = vcmask 1043456
    %v141 = vsel %vm139, %v127, 0
    %143 = vmatprep.subr.mxu0 0.0
    %144 = vmatpush1.msra.mxu0 0.0
    %145 = vmatprep.subr.mxu0 0.0
    %146 = vmatpush1.msra.mxu0 0.0
    %147 = vmatprep.subr.mxu0 0.0
    %148 = vmatpush1.msra.mxu0 0.0
    %149 = vmatprep.subr.mxu0 0.0
    %150 = vmatpush1.msra.mxu0 0.0
    %151 = vmatprep.subr.mxu0 0.0
    %152 = vmatpush1.msra.mxu0 0.0
    %153 = vmatprep.subr.mxu0 0.0
    %154 = vmatpush1.msra.mxu0 0.0
    %155 = vmatprep.subr.mxu0 0.0
    %156 = vmatpush1.msra.mxu0 0.0
    %157 = vmatprep.subr.mxu0 0.0
    %158 = vmatpush1.msra.mxu0 0.0
    %159 = vmatprep.subr.mxu0 0.0
    %160 = vmatpush1.msra.mxu0 0.0
    %161 = vmatprep.subr.mxu0 0.0
    %162 = vmatpush1.msra.mxu0 0.0
    %163 = vmatprep.subr.mxu0 0.0
    %164 = vmatpush1.msra.mxu0 0.0
    %165 = vmatprep.subr.mxu0 0.0
    %166 = vmatpush1.msra.mxu0 0.0
    %167 = vmatprep.subr.mxu0 0.0
    %168 = vmatpush1.msra.mxu0 0.0
    %169 = vmatprep.subr.mxu0 0.0
    %170 = vmatpush1.msra.mxu0 %v141
    %171 = vmatprep.subr.mxu0 0.0
    %172 = vmatpush1.msra.mxu0 %v126
    %173 = vmatprep.subr.mxu0 0.0
    %174 = vmatpush1.msra.mxu0 %v125
    %175 = vmatprep.subr.mxu0 0.0
    %176 = vmatpush2.msra.mxu0 0.0
    %177 = vmatprep.subr.mxu0 0.0
    %178 = vmatpush2.msra.mxu0 0.0
    %179 = vmatprep.subr.mxu0 0.0
    %180 = vmatpush2.msra.mxu0 0.0
    %181 = vmatprep.subr.mxu0 0.0
    %182 = vmatpush2.msra.mxu0 0.0
    %183 = vmatprep.subr.mxu0 0.0
    %184 = vmatpush2.msra.mxu0 0.0
    %185 = vmatprep.subr.mxu0 0.0
    %186 = vmatpush2.msra.mxu0 0.0
    %187 = vmatprep.subr.mxu0 0.0
    %188 = vmatpush2.msra.mxu0 0.0
    %189 = vmatprep.subr.mxu0 0.0
    %190 = vmatpush2.msra.mxu0 0.0
    %191 = vmatprep.subr.mxu0 0.0
    %192 = vmatpush2.msra.mxu0 0.0
    %193 = vmatprep.subr.mxu0 0.0
    %194 = vmatpush2.msra.mxu0 0.0
    %195 = vmatprep.subr.mxu0 0.0
    %196 = vmatpush2.msra.mxu0 0.0
    %197 = vmatprep.subr.mxu0 0.0
    %198 = vmatpush2.msra.mxu0 0.0
    %199 = vmatprep.subr.mxu0 0.0
    %200 = vmatpush2.msra.mxu0 0.0
    %201 = vmatprep.subr.mxu0 0.0
    %202 = vmatpush2.msra.mxu0 0.0
    %203 = vmatprep.subr.mxu0 0.0
    %204 = vmatpush2.msra.mxu0 0.0
    %205 = vmatprep.subr.mxu0 0.0
    %206 = vmatpush2.msra.mxu0 0.0
    %207 = vmatprep.mubr.f32.mxu0 0.0
    %208 = vmatmul.mubr.f32.gmra.mxu0 %v137
    %v209 = vpop.f32.mrf.mxu0
    %v210 = vadd.f32 %v133, %v209
    %v211 = vpop.f32.mrf.mxu0
    %212 = vdwg.mxu0
    %v213 = vxor.u32 %v210, 2147483648
    %v214 = vmul.f32 %v213, 1.442695
    %v215 = vpow.pop %v214
    %v216 = vadd.f32 %v215, 1.0
    %v217 = vrcp.pop %v216
    %v218 = vmul.f32 1.0, %v217
    %v219 = vld [vmem:[%s5] sm:$0xff]
    %v220 = vld [vmem:[%s5 + $0x8] sm:$0x3]
    %v221 = vld [vmem:[%s6] sm:$0x1]
    %v223 = vlaneseq
    %v224 = vshrl.u32 %v223, 7
    %v225 = vsub.s32 0, %v224
    %v226 = vrot.slane %v221, %v225
    %vm228 = vcmask 80896
    %v230 = vsel %vm228, %v218, 0
    %vm232 = vcmask 1041408
    %v234 = vsel %vm232, %v220, 0
    %236 = vmatprep.subr.mxu0 0.0
    %237 = vmatpush1.msra.mxu0 0.0
    %238 = vmatprep.subr.mxu0 0.0
    %239 = vmatpush1.msra.mxu0 0.0
    %240 = vmatprep.subr.mxu0 0.0
    %241 = vmatpush1.msra.mxu0 0.0
    %242 = vmatprep.subr.mxu0 0.0
    %243 = vmatpush1.msra.mxu0 0.0
    %244 = vmatprep.subr.mxu0 0.0
    %245 = vmatpush1.msra.mxu0 0.0
    %246 = vmatprep.subr.mxu0 0.0
    %247 = vmatpush1.msra.mxu0 0.0
    %248 = vmatprep.subr.mxu0 0.0
    %249 = vmatpush1.msra.mxu0 0.0
    %250 = vmatprep.subr.mxu0 0.0
    %251 = vmatpush1.msra.mxu0 0.0
    %252 = vmatprep.subr.mxu0 0.0
    %253 = vmatpush1.msra.mxu0 0.0
    %254 = vmatprep.subr.mxu0 0.0
    %255 = vmatpush1.msra.mxu0 0.0
    %256 = vmatprep.subr.mxu0 0.0
    %257 = vmatpush1.msra.mxu0 0.0
    %258 = vmatprep.subr.mxu0 0.0
    %259 = vmatpush1.msra.mxu0 0.0
    %260 = vmatprep.subr.mxu0 0.0
    %261 = vmatpush1.msra.mxu0 0.0
    %262 = vmatprep.subr.mxu0 0.0
    %263 = vmatpush1.msra.mxu0 0.0
    %264 = vmatprep.subr.mxu0 0.0
    %265 = vmatpush1.msra.mxu0 %v234
    %266 = vmatprep.subr.mxu0 0.0
    %267 = vmatpush1.msra.mxu0 %v219
    %268 = vmatprep.subr.mxu0 0.0
    %269 = vmatpush2.msra.mxu0 0.0
    %270 = vmatprep.subr.mxu0 0.0
    %271 = vmatpush2.msra.mxu0 0.0
    %272 = vmatprep.subr.mxu0 0.0
    %273 = vmatpush2.msra.mxu0 0.0
    %274 = vmatprep.subr.mxu0 0.0
    %275 = vmatpush2.msra.mxu0 0.0
    %276 = vmatprep.subr.mxu0 0.0
    %277 = vmatpush2.msra.mxu0 0.0
    %278 = vmatprep.subr.mxu0 0.0
    %279 = vmatpush2.msra.mxu0 0.0
    %280 = vmatprep.subr.mxu0 0.0
    %281 = vmatpush2.msra.mxu0 0.0
    %282 = vmatprep.subr.mxu0 0.0
    %283 = vmatpush2.msra.mxu0 0.0
    %284 = vmatprep.subr.mxu0 0.0
    %285 = vmatpush2.msra.mxu0 0.0
    %286 = vmatprep.subr.mxu0 0.0
    %287 = vmatpush2.msra.mxu0 0.0
    %288 = vmatprep.subr.mxu0 0.0
    %289 = vmatpush2.msra.mxu0 0.0
    %290 = vmatprep.subr.mxu0 0.0
    %291 = vmatpush2.msra.mxu0 0.0
    %292 = vmatprep.subr.mxu0 0.0
    %293 = vmatpush2.msra.mxu0 0.0
    %294 = vmatprep.subr.mxu0 0.0
    %295 = vmatpush2.msra.mxu0 0.0
    %296 = vmatprep.subr.mxu0 0.0
    %297 = vmatpush2.msra.mxu0 0.0
    %298 = vmatprep.subr.mxu0 0.0
    %299 = vmatpush2.msra.mxu0 0.0
    %300 = vmatprep.mubr.f32.mxu0 0.0
    %301 = vmatmul.mubr.f32.gmra.mxu0 %v230
    %v302 = vpop.f32.mrf.mxu0
    %v303 = vadd.f32 %v226, %v302
    %v304 = vpop.f32.mrf.mxu0
    %305 = vdwg.mxu0
    %v306 = vxor.u32 %v303, 2147483648
    %v307 = vmul.f32 %v306, 1.442695
    %v308 = vpow.pop %v307
    %v309 = vadd.f32 %v308, 1.0
    %v310 = vrcp.pop %v309
    %v311 = vmul.f32 1.0, %v310
    %v312 = vld [vmem:[%s7] sm:$0xff]
    %v313 = vld [vmem:[%s7 + $0x8] sm:$0xff]
    %v314 = vld [vmem:[%s7 + $0x10] sm:$0xf]
    %v315 = vld [vmem:[%s8] sm:$0x1]
    %v317 = vlaneseq
    %v318 = vshrl.u32 %v317, 7
    %v319 = vsub.s32 0, %v318
    %v320 = vrot.slane %v315, %v319
    %v323 = vsel %vm135, %v311, 0
    %v326 = vsel %vm139, %v314, 0
    %328 = vmatprep.subr.mxu0 0.0
    %329 = vmatpush1.msra.mxu0 0.0
    %330 = vmatprep.subr.mxu0 0.0
    %331 = vmatpush1.msra.mxu0 0.0
    %332 = vmatprep.subr.mxu0 0.0
    %333 = vmatpush1.msra.mxu0 0.0
    %334 = vmatprep.subr.mxu0 0.0
    %335 = vmatpush1.msra.mxu0 0.0
    %336 = vmatprep.subr.mxu0 0.0
    %337 = vmatpush1.msra.mxu0 0.0
    %338 = vmatprep.subr.mxu0 0.0
    %339 = vmatpush1.msra.mxu0 0.0
    %340 = vmatprep.subr.mxu0 0.0
    %341 = vmatpush1.msra.mxu0 0.0
    %342 = vmatprep.subr.mxu0 0.0
    %343 = vmatpush1.msra.mxu0 0.0
    %344 = vmatprep.subr.mxu0 0.0
    %345 = vmatpush1.msra.mxu0 0.0
    %346 = vmatprep.subr.mxu0 0.0
    %347 = vmatpush1.msra.mxu0 0.0
    %348 = vmatprep.subr.mxu0 0.0
    %349 = vmatpush1.msra.mxu0 0.0
    %350 = vmatprep.subr.mxu0 0.0
    %351 = vmatpush1.msra.mxu0 0.0
    %352 = vmatprep.subr.mxu0 0.0
    %353 = vmatpush1.msra.mxu0 0.0
    %354 = vmatprep.subr.mxu0 0.0
    %355 = vmatpush1.msra.mxu0 %v326
    %356 = vmatprep.subr.mxu0 0.0
    %357 = vmatpush1.msra.mxu0 %v313
    %358 = vmatprep.subr.mxu0 0.0
    %359 = vmatpush1.msra.mxu0 %v312
    %360 = vmatprep.subr.mxu0 0.0
    %361 = vmatpush2.msra.mxu0 0.0
    %362 = vmatprep.subr.mxu0 0.0
    %363 = vmatpush2.msra.mxu0 0.0
    %364 = vmatprep.subr.mxu0 0.0
    %365 = vmatpush2.msra.mxu0 0.0
    %366 = vmatprep.subr.mxu0 0.0
    %367 = vmatpush2.msra.mxu0 0.0
    %368 = vmatprep.subr.mxu0 0.0
    %369 = vmatpush2.msra.mxu0 0.0
    %370 = vmatprep.subr.mxu0 0.0
    %371 = vmatpush2.msra.mxu0 0.0
    %372 = vmatprep.subr.mxu0 0.0
    %373 = vmatpush2.msra.mxu0 0.0
    %374 = vmatprep.subr.mxu0 0.0
    %375 = vmatpush2.msra.mxu0 0.0
    %376 = vmatprep.subr.mxu0 0.0
    %377 = vmatpush2.msra.mxu0 0.0
    %378 = vmatprep.subr.mxu0 0.0
    %379 = vmatpush2.msra.mxu0 0.0
    %380 = vmatprep.subr.mxu0 0.0
    %381 = vmatpush2.msra.mxu0 0.0
    %382 = vmatprep.subr.mxu0 0.0
    %383 = vmatpush2.msra.mxu0 0.0
    %384 = vmatprep.subr.mxu0 0.0
    %385 = vmatpush2.msra.mxu0 0.0
    %386 = vmatprep.subr.mxu0 0.0
    %387 = vmatpush2.msra.mxu0 0.0
    %388 = vmatprep.subr.mxu0 0.0
    %389 = vmatpush2.msra.mxu0 0.0
    %390 = vmatprep.subr.mxu0 0.0
    %391 = vmatpush2.msra.mxu0 0.0
    %392 = vmatprep.mubr.f32.mxu0 0.0
    %393 = vmatmul.mubr.f32.gmra.mxu0 %v323
    %v394 = vpop.f32.mrf.mxu0
    %v395 = vadd.f32 %v320, %v394
    %v396 = vpop.f32.mrf.mxu0
    %397 = vdwg.mxu0
    %398 = vst.msk [vmem:[#allocation2] sm:$0xff] %vm45, %v395
    // Predicated region
    $region38: #{tpu_custom_call.1} parent=1 // pred_check
      _
    $region39: #{tpu_custom_call.1} parent=1 // pred_check_branch
      %400 = sbr.rel (0) target = $region41
    $region40: #{tpu_custom_call.1} parent=1 // pred_region
      %s402 = ssub.s32 128, 128
      %403 = vsyncadd [#allocation3], %s402
      %s405 = sshll.u32 [#allocation2], 4
      %s406 = int_to_ptr.vmem [resolvable:$true] %s405
      %408 = dma.vmem_to_hbm [thread:$0]  %s406, 128, %s9, [#allocation3]
    $region41: #{tpu_custom_call.1} parent=1 // pred_fallthru
      _
    // Predicated region
    $region42: #{tpu_custom_call.1} parent=1 // pred_check
      _
    $region43: #{tpu_custom_call.1} parent=1 // pred_check_branch
      %410 = sbr.rel (0) target = $region45
    $region44: #{tpu_custom_call.1} parent=1 // pred_region
      %411 = dma.done [#allocation3], 128
    $region45: #{tpu_custom_call.1} parent=1 // pred_fallthru
      _
    %412 = vsyncpa [#allocation3], 1

</llo_original>
